<compile_context>
chip_gen: v5e
topology: v5e:2x2
jax: 0.10.0
libtpu: 0.0.40
codegen_flags: <defaults>
</compile_context>

<pallas_src>
import functools

import jax
import jax.numpy as jnp
from jax.experimental import pallas as pl
from jax.experimental.pallas import tpu as pltpu


def _round_up(x: int, m: int) -> int:
    return ((x + m - 1) // m) * m


def _linear_kernel(x_ref, w_ref, b_ref, o_ref):
    # x_ref: (tm, in_dim), w_ref: (in_dim, out_pad) resident, b_ref: (1, out_pad) resident
    acc = jnp.dot(x_ref[...], w_ref[...], preferred_element_type=jnp.float32)
    o_ref[...] = (acc + b_ref[...]).astype(o_ref.dtype)


@functools.partial(jax.jit, static_argnames=("tm",))
def deterministic_forward(x, w_t, b, *, tm: int = 512):
    """Pallas equivalent of Deterministic.forward (== nn.Linear).

    x   : (B, in_dim)        float32
    w_t : (in_dim, out_dim)  float32   (transpose of PyTorch's weight)
    b   : (out_dim,)         float32
    returns (B, out_dim) float32
    """
    B, in_dim = x.shape
    out_dim = w_t.shape[1]

    # --- lane-dense output: pad N up to a multiple of 128 (zeros) -------------
    out_pad = _round_up(out_dim, 128)
    if out_pad != out_dim:
        w_t = jnp.pad(w_t, ((0, 0), (0, out_pad - out_dim)))
        b = jnp.pad(b, (0, out_pad - out_dim))
    b2d = b.reshape(1, out_pad)

    # --- batch tiling: tm rows per grid step, sublane-aligned -----------------
    tm_eff = min(tm, _round_up(B, 8))
    b_pad = _round_up(B, tm_eff)
    if b_pad != B:
        x = jnp.pad(x, ((0, b_pad - B), (0, 0)))
    grid = (b_pad // tm_eff,)

    # --- VMEM budget: 2x (double-buffered) input+output tiles + resident W, b --
    block_bytes = 4 * (2 * tm_eff * (in_dim + out_pad) + in_dim * out_pad + out_pad)
    vmem_limit = int(min(100 * 1024 * 1024, max(32 * 1024 * 1024, 2 * block_bytes)))

    cost = pl.CostEstimate(
        flops=2 * B * in_dim * out_dim,
        transcendentals=0,
        bytes_accessed=4 * (B * in_dim + in_dim * out_dim + B * out_dim + out_dim),
    )

    out = pl.pallas_call(
        _linear_kernel,
        out_shape=jax.ShapeDtypeStruct((b_pad, out_pad), x.dtype),
        grid_spec=pltpu.PrefetchScalarGridSpec(
            num_scalar_prefetch=0,
            grid=grid,
            in_specs=[
                pl.BlockSpec((tm_eff, in_dim), lambda i: (i, 0)),   # streamed batch tiles
                pl.BlockSpec((in_dim, out_pad), lambda i: (0, 0)),  # resident weights
                pl.BlockSpec((1, out_pad), lambda i: (0, 0)),       # resident bias
            ],
            out_specs=pl.BlockSpec((tm_eff, out_pad), lambda i: (i, 0)),
        ),
        compiler_params=pltpu.CompilerParams(
            dimension_semantics=("parallel",),  # shards batch across TCs on v7x
            vmem_limit_bytes=vmem_limit,
        ),
        cost_estimate=cost,
    )(x, w_t, b2d)

    # Strip batch + lane padding back to the logical shape.
    return out[:B, :out_dim]


def unflatten_ac_tensor(ac_tensor, ac_chunk, ac_dim):
    # Mirrors ActionDistribution.unflatten_ac_tensor
    out_shape = list(ac_tensor.shape[:-1]) + [ac_chunk, ac_dim]
    return ac_tensor.reshape(out_shape)


def get_actions(x, w_t, b, ac_chunk, ac_dim):
    # Deterministic._sample == forward (no randomness), then unflatten.
    acs = deterministic_forward(x, w_t, b)
    return unflatten_ac_tensor(acs, ac_chunk, ac_dim)


if __name__ == "__main__":
    # Small shapes consistent with the module:
    batch = 2
    in_dim = 32
    ac_dim = 4
    ac_chunk = 2
    num_ac_pred = ac_chunk * ac_dim  # nn.Linear(in_dim, num_ac_pred)

    key = jax.random.PRNGKey(0)
    kx, kw, kb = jax.random.split(key, 3)

    x = jax.random.normal(kx, (batch, in_dim), dtype=jnp.float32)

    # Parameter init mimicking nn.Linear's uniform(-1/sqrt(in), 1/sqrt(in))
    bound = 1.0 / jnp.sqrt(jnp.float32(in_dim))
    w = jax.random.uniform(kw, (num_ac_pred, in_dim), jnp.float32, -bound, bound)
    b = jax.random.uniform(kb, (num_ac_pred,), jnp.float32, -bound, bound)
    w_t = w.T  # (in_dim, num_ac_pred) for lane-dense matmul

    out = jax.block_until_ready(deterministic_forward(x, w_t, b))

    # Reference check in plain JAX (same math as the PyTorch Linear)
    ref = x @ w_t + b
    assert out.shape == (batch, num_ac_pred)
    assert jnp.allclose(out, ref, atol=1e-5, rtol=1e-5)

    # get_actions path (reshape glue)
    acts = jax.block_until_ready(get_actions(x, w_t, b, ac_chunk, ac_dim))
    assert acts.shape == (batch, ac_chunk, ac_dim)
    assert jnp.allclose(acts, ref.reshape(batch, ac_chunk, ac_dim), atol=1e-5, rtol=1e-5)

    print("KERNEL_OK")
</pallas_src>

<mosaic_0001>
module attributes {stable_mosaic.version = 11 : i64} {
  func.func @_linear_kernel(%arg0: i32, %arg1: memref<8x32xf32, #tpu.memory_space<vmem>>, %arg2: memref<32x128xf32, #tpu.memory_space<vmem>>, %arg3: memref<1x128xf32, #tpu.memory_space<vmem>>, %arg4: memref<8x128xf32, #tpu.memory_space<vmem>>) attributes {dimension_semantics = [#tpu.dimension_semantics<parallel>], iteration_bounds = array<i64: 1>, scalar_prefetch = 0 : i64, scratch_operands = 0 : i64, tpu.core_type = #tpu.core_type<tc>, window_params = [{transform_indices = @transform_0, window_bounds = array<i64: 8, 32>}, {pipeline_mode = #tpu.pipeline_mode<synchronous>, transform_indices = @transform_1, window_bounds = array<i64: 32, 128>}, {pipeline_mode = #tpu.pipeline_mode<synchronous>, transform_indices = @transform_2, window_bounds = array<i64: 1, 128>}, {transform_indices = @transform_3, window_bounds = array<i64: 8, 128>}]} {
    %c0 = arith.constant 0 : index
    %c0_0 = arith.constant 0 : index
    %0 = vector.load %arg1[%c0, %c0_0] : memref<8x32xf32, #tpu.memory_space<vmem>>, vector<8x32xf32>
    %c0_1 = arith.constant 0 : index
    %c0_2 = arith.constant 0 : index
    %1 = vector.load %arg2[%c0_1, %c0_2] : memref<32x128xf32, #tpu.memory_space<vmem>>, vector<32x128xf32>
    %cst = arith.constant dense<0.000000e+00> : vector<8x128xf32>
    %2 = tpu.matmul %0, %1, %cst {dimension_numbers = #tpu.dot_dimension_numbers<[1], [0], [0], [1], [0, 0, 1, 1], [], []>} : vector<8x32xf32>, vector<32x128xf32>, vector<8x128xf32> -> vector<8x128xf32>
    %c0_3 = arith.constant 0 : index
    %c0_4 = arith.constant 0 : index
    %3 = vector.load %arg3[%c0_3, %c0_4] : memref<1x128xf32, #tpu.memory_space<vmem>>, vector<1x128xf32>
    %4 = vector.broadcast %3 : vector<1x128xf32> to vector<8x128xf32>
    %5 = arith.addf %2, %4 : vector<8x128xf32>
    %c0_5 = arith.constant 0 : index
    %c0_6 = arith.constant 0 : index
    %6 = vector.load %arg4[%c0_5, %c0_6] : memref<8x128xf32, #tpu.memory_space<vmem>>, vector<8x128xf32>
    tpu.vector_store %arg4[%c0_5, %c0_6], %5 {strides = array<i32>} : memref<8x128xf32, #tpu.memory_space<vmem>>, vector<8x128xf32>,
    return
  }
  func.func @transform_0(%arg0: i32) -> (i32, i32) {
    %c0_i32 = arith.constant 0 : i32
    %c0_i32_0 = arith.constant 0 : i32
    return %arg0, %c0_i32 : i32, i32
  }
  func.func @transform_1(%arg0: i32) -> (i32, i32) {
    %c0_i32 = arith.constant 0 : i32
    %c0_i32_0 = arith.constant 0 : i32
    %c0_i32_1 = arith.constant 0 : i32
    return %c0_i32, %c0_i32_0 : i32, i32
  }
  func.func @transform_2(%arg0: i32) -> (i32, i32) {
    %c0_i32 = arith.constant 0 : i32
    %c0_i32_0 = arith.constant 0 : i32
    %c0_i32_1 = arith.constant 0 : i32
    return %c0_i32, %c0_i32_0 : i32, i32
  }
  func.func @transform_3(%arg0: i32) -> (i32, i32) {
    %c0_i32 = arith.constant 0 : i32
    %c0_i32_0 = arith.constant 0 : i32
    return %arg0, %c0_i32 : i32, i32
  }
}

</mosaic_0001>

<llo_original>
// kernel: deterministic_forward.1
$region0: #{deterministic_forward.1}
  #allocation0 [shape = 'u32[]', space=smem, size = 0x4, offset = 0x4, fixed_abs, tag = 'smem constant byte address 0x4 - core index']
  #allocation1 [shape = 'u32[72,128]{1,0:T(1,128)}', space=vmem, size = 0x9000, scoped, tag = 'internal scratch']
  %s0 = inlined_call_operand.vmem [shape: f32[8,32], index: 0, kind: input, shape index: {}]
  %s1 = inlined_call_operand.vmem [shape: f32[32,128], index: 1, kind: input, shape index: {}]
  %s2 = inlined_call_operand.vmem [shape: f32[1,128], index: 2, kind: input, shape index: {}]
  %s3 = inlined_call_operand.vmem [shape: f32[8,128], index: 3, kind: output, shape index: {}]
  %s4 = sld [smem:[#allocation0]]
  $region22: #{deterministic_forward.1} parent=0
    _
  %s6 = ssub.s32 1, %s4
  %s7 = scalar_select 0, %s6, %s4
  // Predicated region
  $region2: #{deterministic_forward.1} parent=0 // pred_check
    _
  $region3: #{deterministic_forward.1} parent=0 // pred_check_branch
    %9 = sbr.rel (0) target = $region5
  $region4: #{deterministic_forward.1} parent=0 // pred_region
    _
  $region5: #{deterministic_forward.1} parent=0 // pred_fallthru
    _
  // Predicated region
  $region6: #{deterministic_forward.1} parent=0 // pred_check
    _
  $region7: #{deterministic_forward.1} parent=0 // pred_check_branch
    %11 = sbr.rel (0) target = $region9
  $region8: #{deterministic_forward.1} parent=0 // pred_region
    _
  $region9: #{deterministic_forward.1} parent=0 // pred_fallthru
    _
  // Predicated region
  $region10: #{deterministic_forward.1} parent=0 // pred_check
    _
  $region11: #{deterministic_forward.1} parent=0 // pred_check_branch
    %13 = sbr.rel (0) target = $region13
  $region12: #{deterministic_forward.1} parent=0 // pred_region
    _
  $region13: #{deterministic_forward.1} parent=0 // pred_fallthru
    _
  %v14 = vld [vmem:[%s0] sm:$0xff]
  %v15 = vld [vmem:[%s1] sm:$0xff]
  %v16 = vld [vmem:[%s1 + $0x8] sm:$0xff]
  %v17 = vld [vmem:[%s1 + $0x10] sm:$0xff]
  %v18 = vld [vmem:[%s1 + $0x18] sm:$0xff]
  %v19 = vld [vmem:[%s2] sm:$0x1]
  %v21 = vperm.slane %v19, 0
  %vm23 = vcmask 261120
  %v25 = vsel %vm23, %v14, 0
  %27 = vmatpush.msra.mxu0 0.0
  %28 = vmatpush.msra.mxu0 0.0
  %29 = vmatpush.msra.mxu0 0.0
  %30 = vmatpush.msra.mxu0 0.0
  %31 = vmatpush.msra.mxu0 0.0
  %32 = vmatpush.msra.mxu0 0.0
  %33 = vmatpush.msra.mxu0 0.0
  %34 = vmatpush.msra.mxu0 0.0
  %35 = vmatpush.msra.mxu0 0.0
  %36 = vmatpush.msra.mxu0 0.0
  %37 = vmatpush.msra.mxu0 0.0
  %38 = vmatpush.msra.mxu0 0.0
  %39 = vmatpush.msra.mxu0 %v18
  %40 = vmatpush.msra.mxu0 %v17
  %41 = vmatpush.msra.mxu0 %v16
  %42 = vmatpush.msra.mxu0 %v15
  %43 = vmatmul.f32.gmra.mxu0 %v25
  %v44 = vpop.f32.mrf.mxu0
  %v45 = vadd.f32 %v21, %v44
  %46 = vdwg.mxu0
  %47 = vst [vmem:[%s3] sm:$0xff] %v45
  // Predicated region
  $region14: #{deterministic_forward.1} parent=0 // pred_check
    _
  $region15: #{deterministic_forward.1} parent=0 // pred_check_branch
    %49 = sbr.rel (0) target = $region17
  $region16: #{deterministic_forward.1} parent=0 // pred_region
    _
  $region17: #{deterministic_forward.1} parent=0 // pred_fallthru
    _
  // Predicated region
  $region18: #{deterministic_forward.1} parent=0 // pred_check
    _
  $region19: #{deterministic_forward.1} parent=0 // pred_check_branch
    %51 = sbr.rel (0) target = $region21
  $region20: #{deterministic_forward.1} parent=0 // pred_region
    _
  $region21: #{deterministic_forward.1} parent=0 // pred_fallthru
    _

</llo_original>
